<compile_context>
chip_gen: v5e
topology: v5e:2x2
jax: 0.10.0
libtpu: 0.0.40
codegen_flags: <defaults>
</compile_context>

<pallas_src>
import functools
import math

import jax
import jax.numpy as jnp
from jax import lax
from jax.experimental import pallas as pl
from jax.experimental.pallas import tpu as pltpu

_LANE = 128
_SUBLANE = 8
_DEFAULT_VMEM_BUDGET = 24 * 1024 * 1024  # conservative: fits v7x 32 MiB scoped/core


def _round_up(n: int, m: int) -> int:
    return ((n + m - 1) // m) * m


def _select_tiles(b: int, d: int, itemsize: int, budget: int):
    """Pick (tb, tk) minimizing padded MXU work under an explicit VMEM budget."""
    b8 = _round_up(b, _SUBLANE)
    d0 = _round_up(d, _LANE)
    best = None
    for cand in (512, 384, 256, 128, 64, 32, 16, 8):
        tb = min(cand, b8)
        panel = 2 * tb * d0 * itemsize        # resident lhs row-panel (double-buffered)
        acc = tb * tb * 4                     # f32 Gram-tile accumulator
        rhs_room = budget - panel - acc
        tk_cap = (rhs_room // max(2 * tb * itemsize, 1)) // _LANE * _LANE
        if tk_cap < _LANE:
            continue
        nk = -(-d0 // tk_cap)                 # ceil
        tk = _round_up(-(-d0 // nk), _LANE)
        b_pad = _round_up(b, tb)
        # Padded Gram work with a mild penalty for tiny tiles (per-step overhead,
        # low arithmetic intensity on the 256-wide MXU).
        cost = float(b_pad) ** 2 * (1.0 + 64.0 / tb)
        if best is None or cost < best[0]:
            best = (cost, tb, tk)
    if best is None:
        # Feature dim too large for a resident row-panel even at tb=8; fall back
        # to a minimal tiling (vmem_limit is derived from actual sizes below).
        return min(8, b8), _LANE
    return best[1], best[2]


def _contrast_tiles_kernel(i_map_ref, j_map_ref, xl_ref, xr_ref,
                           sum_ref, tr_ref, acc_ref, *, tk: int):
    """One (tile-pair t, k-chunk) grid step of the symmetric |x x^T| reduction.

    i_map_ref/j_map_ref : SMEM (n_tri,) int32  flat triangle index -> row blocks
    xl_ref              : VMEM (tb, d_pad)     resident lhs row-panel (block i_t)
    xr_ref              : VMEM (tb, tk)        streamed rhs chunk (block j_t, k)
    sum_ref / tr_ref    : VMEM (1, 1, 128)     per-tile-pair partials (broadcast)
    acc_ref             : VMEM (tb, tb) f32    Gram-tile accumulator over k
    """
    t = pl.program_id(0)
    k = pl.program_id(1)
    nk = pl.num_programs(1)
    i = i_map_ref[t]
    j = j_map_ref[t]

    @pl.when(k == 0)
    def _():
        acc_ref[...] = jnp.zeros_like(acc_ref)

    # Slice the k-chunk out of the resident lhs panel (no re-DMA per k/j).
    if tk == xl_ref.shape[1]:           # n_k == 1: the chunk is the whole panel
        xl = xl_ref[...]
    else:
        k0 = pl.multiple_of(k * tk, _LANE)
        xl = xl_ref[:, pl.ds(k0, tk)]

    # Contract the feature axis of both row tiles on the MXU (no materialized
    # x.T; rhs contraction dim = 1), accumulating in f32.
    acc_ref[...] += lax.dot_general(
        xl, xr_ref[...],
        dimension_numbers=(((1,), (1,)), ((), ())),
        preferred_element_type=jnp.float32,
    )

    @pl.when(k == nk - 1)
    def _():
        g = jnp.abs(acc_ref[...])
        tile_sum = jnp.sum(g)
        # Off-diagonal tile pairs stand in for both (i, j) and (j, i).
        scale = jnp.where(i == j, jnp.float32(1.0), jnp.float32(2.0))
        sum_ref[...] = jnp.full(sum_ref.shape, scale * tile_sum, jnp.float32)
        # trace(|C|): only diagonal blocks contribute; read the tile diagonal.
        rows = lax.broadcasted_iota(jnp.int32, g.shape, 0)
        cols = lax.broadcasted_iota(jnp.int32, g.shape, 1)
        diag = jnp.sum(jnp.where(rows == cols, g, jnp.float32(0.0)))
        tr_ref[...] = jnp.full(
            tr_ref.shape, jnp.where(i == j, diag, jnp.float32(0.0)), jnp.float32)


def contrast_loss(x: jax.Array, weight, *, tb: int | None = None,
                  tk: int | None = None, compute_dtype=None,
                  vmem_budget_bytes: int = _DEFAULT_VMEM_BUDGET) -> jax.Array:
    """Pallas implementation of ContrastLoss.forward.

    x             : (b, d) float array (f32 or bf16)
    weight        : scalar (or shape-(1,)) parameter
    compute_dtype : optional dtype to cast x to before the kernel (e.g. bf16
                    for the bf16-native MXUs on v6e/v7x); f32 accumulation is
                    always used inside the kernel.
    """
    b, d = x.shape
    if compute_dtype is not None:
        x = x.astype(compute_dtype)
    itemsize = jnp.dtype(x.dtype).itemsize

    auto_tb, auto_tk = _select_tiles(b, d, itemsize, vmem_budget_bytes)
    tb = _round_up(tb, _SUBLANE) if tb is not None else auto_tb
    tk = _round_up(tk, _LANE) if tk is not None else auto_tk

    b_pad = _round_up(b, tb)
    d_pad = _round_up(d, tk)

    # Zero padding is exact: padded rows/cols contribute 0 to |C|, sum, trace;
    # the log(d + b) factor below uses the original shape.
    if (b_pad, d_pad) != (b, d):
        x_p = jnp.pad(x, ((0, b_pad - b), (0, d_pad - d)))
    else:
        x_p = x

    n_b = b_pad // tb
    n_k = d_pad // tk
    tri = [(i, j) for i in range(n_b) for j in range(i, n_b)]
    n_tri = len(tri)
    i_map = jnp.asarray([p[0] for p in tri], dtype=jnp.int32)
    j_map = jnp.asarray([p[1] for p in tri], dtype=jnp.int32)

    # Explicit VMEM accounting -> vmem_limit_bytes (v5e default scoped limit is
    # only 16 MiB; v7x has 64 MiB physical / 32 MiB default scoped per core).
    vmem_need = (2 * tb * d_pad * itemsize      # resident lhs panel (dbl-buffered)
                 + 2 * tb * tk * itemsize       # streamed rhs chunk (dbl-buffered)
                 + tb * tb * 4                  # f32 Gram accumulator scratch
                 + 2 * 2 * _LANE * 4)           # two (1,1,128) partial outputs
    vmem_limit = int(min(max(vmem_need + (2 << 20), 32 << 20), 100 << 20))

    cost = pl.CostEstimate(
        flops=int(2 * n_tri * tb * tb * d_pad),
        transcendentals=0,
        bytes_accessed=int((n_b + n_tri) * tb * d_pad * itemsize
                           + n_tri * 2 * _LANE * 4),
    )

    kernel = functools.partial(_contrast_tiles_kernel, tk=tk)
    sums, traces = pl.pallas_call(
        kernel,
        out_shape=(jax.ShapeDtypeStruct((n_tri, 1, _LANE), jnp.float32),
                   jax.ShapeDtypeStruct((n_tri, 1, _LANE), jnp.float32)),
        grid_spec=pltpu.PrefetchScalarGridSpec(
            num_scalar_prefetch=2,
            grid=(n_tri, n_k),
            in_specs=[
                # Resident lhs row-panel: constant block index across k and
                # across consecutive tile pairs sharing i -> DMA skipped.
                pl.BlockSpec((tb, d_pad), lambda t, k, im, jm: (im[t], 0)),
                # Streamed rhs chunk.
                pl.BlockSpec((tb, tk), lambda t, k, im, jm: (jm[t], k)),
            ],
            out_specs=[
                pl.BlockSpec((1, 1, _LANE), lambda t, k, im, jm: (t, 0, 0)),
                pl.BlockSpec((1, 1, _LANE), lambda t, k, im, jm: (t, 0, 0)),
            ],
            scratch_shapes=[pltpu.VMEM((tb, tb), jnp.float32)],
        ),
        compiler_params=pltpu.CompilerParams(
            dimension_semantics=("parallel", "arbitrary"),
            vmem_limit_bytes=vmem_limit,
        ),
        cost_estimate=cost,
    )(i_map, j_map, x_p, x_p)

    # O(n_tri) scalar epilogue (parameter / shape glue) in plain JAX.
    sum_c = jnp.sum(sums[:, 0, 0])
    trace_c = jnp.sum(traces[:, 0, 0])
    w = jnp.asarray(weight, jnp.float32).reshape(())
    return (1.0 - trace_c / sum_c) * math.log(d + b) * jnp.exp(w)


def contrast_loss_ref(x: jax.Array, weight) -> jax.Array:
    """Pure-JAX reference mirroring the PyTorch module literally."""
    b, d = x.shape
    xf = x.astype(jnp.float32)
    c = jnp.abs(xf @ xf.T)
    w = jnp.asarray(weight, jnp.float32).reshape(())
    return (1.0 - jnp.trace(c) / jnp.sum(c)) * math.log(d + b) * jnp.exp(w)


if __name__ == "__main__":
    key = jax.random.PRNGKey(0)
    k1, k2, k3 = jax.random.split(key, 3)
    weight = jnp.zeros((), dtype=jnp.float32)

    # 1) Small batch of representation vectors (module default weight = 0.0):
    #    single tile pair, single k chunk.
    x1 = jax.random.normal(k1, (8, 32), dtype=jnp.float32)
    out1 = jax.block_until_ready(contrast_loss(x1, weight))
    ref1 = jax.block_until_ready(contrast_loss_ref(x1, weight))
    assert out1.shape == ()
    assert jnp.allclose(out1, ref1, rtol=1e-3, atol=1e-3), (out1, ref1)

    # 2) Multi-tile triangle path: n_b = 3 -> 6 tile pairs, n_k = 2; nonzero
    #    weight; exercises off-diagonal 2x weighting and in-kernel k slicing of
    #    the resident lhs panel.
    x2 = jax.random.normal(k2, (24, 256), dtype=jnp.float32)
    w2 = jnp.asarray(0.3, dtype=jnp.float32)
    out2 = jax.block_until_ready(contrast_loss(x2, w2, tb=8, tk=128))
    ref2 = jax.block_until_ready(contrast_loss_ref(x2, w2))
    assert jnp.allclose(out2, ref2, rtol=1e-3, atol=1e-3), (out2, ref2)

    # 3) Ragged shapes (zero-padding path), plus the optional bf16 compute flag.
    x3 = jax.random.normal(k3, (20, 200), dtype=jnp.float32)
    out3 = jax.block_until_ready(contrast_loss(x3, weight, tb=16, tk=128))
    ref3 = jax.block_until_ready(contrast_loss_ref(x3, weight))
    assert jnp.allclose(out3, ref3, rtol=1e-3, atol=1e-3), (out3, ref3)

    out3_bf16 = jax.block_until_ready(
        contrast_loss(x3, weight, compute_dtype=jnp.bfloat16))
    assert jnp.allclose(out3_bf16, ref3, rtol=5e-2, atol=5e-2), (out3_bf16, ref3)

    print("KERNEL_OK")
</pallas_src>

<mosaic_0001>
module attributes {stable_mosaic.version = 11 : i64} {
  func.func @_contrast_tiles_kernel(%arg0: i32, %arg1: i32, %arg2: memref<1xi32, #tpu.memory_space<smem>>, %arg3: memref<1xi32, #tpu.memory_space<smem>>, %arg4: memref<8x128xf32, #tpu.memory_space<vmem>>, %arg5: memref<8x128xf32, #tpu.memory_space<vmem>>, %arg6: memref<1x1x128xf32, #tpu.memory_space<vmem>>, %arg7: memref<1x1x128xf32, #tpu.memory_space<vmem>>, %arg8: memref<8x8xf32, #tpu.memory_space<vmem>>) attributes {dimension_semantics = [#tpu.dimension_semantics<parallel>, #tpu.dimension_semantics<arbitrary>], iteration_bounds = array<i64: 1, 1>, scalar_prefetch = 2 : i64, scratch_operands = 1 : i64, tpu.core_type = #tpu.core_type<tc>, window_params = [{transform_indices = @transform_0, window_bounds = array<i64: 8, 128>}, {transform_indices = @transform_1, window_bounds = array<i64: 8, 128>}, {transform_indices = @transform_2, window_bounds = array<i64: 1, 1, 128>}, {transform_indices = @transform_3, window_bounds = array<i64: 1, 1, 128>}]} {
    %0 = arith.index_cast %arg0 : i32 to index
    %1 = memref.load %arg2[%0] : memref<1xi32, #tpu.memory_space<smem>>
    %2 = arith.index_cast %arg0 : i32 to index
    %3 = memref.load %arg3[%2] : memref<1xi32, #tpu.memory_space<smem>>
    %c0_i32 = arith.constant 0 : i32
    %4 = arith.cmpi eq, %arg1, %c0_i32 : i32
    %5 = arith.extui %4 : i1 to i32
    %c0_i32_0 = arith.constant 0 : i32
    %6 = arith.cmpi ne, %5, %c0_i32_0 : i32
    scf.if %6 {
      %cst_10 = arith.constant 0.000000e+00 : f32
      %16 = vector.broadcast %cst_10 : f32 to vector<8x8xf32>
      %c0_11 = arith.constant 0 : index
      %c0_12 = arith.constant 0 : index
      %17 = vector.load %arg8[%c0_11, %c0_12] : memref<8x8xf32, #tpu.memory_space<vmem>>, vector<8x8xf32>
      tpu.vector_store %arg8[%c0_11, %c0_12], %16 {strides = array<i32>} : memref<8x8xf32, #tpu.memory_space<vmem>>, vector<8x8xf32>,
    } else {
    }
    %c0 = arith.constant 0 : index
    %c0_1 = arith.constant 0 : index
    %7 = vector.load %arg4[%c0, %c0_1] : memref<8x128xf32, #tpu.memory_space<vmem>>, vector<8x128xf32>
    %c0_2 = arith.constant 0 : index
    %c0_3 = arith.constant 0 : index
    %8 = vector.load %arg8[%c0_2, %c0_3] : memref<8x8xf32, #tpu.memory_space<vmem>>, vector<8x8xf32>
    %c0_4 = arith.constant 0 : index
    %c0_5 = arith.constant 0 : index
    %9 = vector.load %arg5[%c0_4, %c0_5] : memref<8x128xf32, #tpu.memory_space<vmem>>, vector<8x128xf32>
    %cst = arith.constant dense<0.000000e+00> : vector<8x8xf32>
    %10 = tpu.matmul %7, %9, %cst {dimension_numbers = #tpu.dot_dimension_numbers<[1], [1], [0], [0], [0, 0, 1, 0], [], []>} : vector<8x128xf32>, vector<8x128xf32>, vector<8x8xf32> -> vector<8x8xf32>
    %11 = arith.addf %8, %10 : vector<8x8xf32>
    %c0_6 = arith.constant 0 : index
    %c0_7 = arith.constant 0 : index
    %12 = vector.load %arg8[%c0_6, %c0_7] : memref<8x8xf32, #tpu.memory_space<vmem>>, vector<8x8xf32>
    tpu.vector_store %arg8[%c0_6, %c0_7], %11 {strides = array<i32>} : memref<8x8xf32, #tpu.memory_space<vmem>>, vector<8x8xf32>,
    %c0_i32_8 = arith.constant 0 : i32
    %13 = arith.cmpi eq, %arg1, %c0_i32_8 : i32
    %14 = arith.extui %13 : i1 to i32
    %c0_i32_9 = arith.constant 0 : i32
    %15 = arith.cmpi ne, %14, %c0_i32_9 : i32
    scf.if %15 {
      %c0_10 = arith.constant 0 : index
      %c0_11 = arith.constant 0 : index
      %16 = vector.load %arg8[%c0_10, %c0_11] : memref<8x8xf32, #tpu.memory_space<vmem>>, vector<8x8xf32>
      %17 = math.absf %16 : vector<8x8xf32>
      %18 = vector.shape_cast %17 : vector<8x8xf32> to vector<1x8x8xf32>
      %cst_12 = arith.constant dense<0.000000e+00> : vector<1xf32>
      %19 = vector.multi_reduction <add>, %18, %cst_12 [1, 2] : vector<1x8x8xf32> to vector<1xf32>
      %20 = vector.shape_cast %19 : vector<1xf32> to vector<1x1x1xf32>
      %21 = vector.extract %20[0, 0, 0] : f32 from vector<1x1x1xf32>
      %22 = arith.cmpi eq, %1, %3 : i32
      %cst_13 = arith.constant 1.000000e+00 : f32
      %cst_14 = arith.constant 2.000000e+00 : f32
      %23 = arith.select %22, %cst_13, %cst_14 : f32
      %24 = arith.mulf %23, %21 : f32
      %25 = vector.broadcast %24 : f32 to vector<1x1x128xf32>
      %c0_15 = arith.constant 0 : index
      %c0_16 = arith.constant 0 : index
      %c0_17 = arith.constant 0 : index
      %26 = vector.load %arg6[%c0_15, %c0_16, %c0_17] : memref<1x1x128xf32, #tpu.memory_space<vmem>>, vector<1x1x128xf32>
      tpu.vector_store %arg6[%c0_15, %c0_16, %c0_17], %25 {strides = array<i32>} : memref<1x1x128xf32, #tpu.memory_space<vmem>>, vector<1x1x128xf32>,
      %27 = tpu.iota {dimensions = array<i32: 0>} : vector<8x8xi32>
      %28 = tpu.iota {dimensions = array<i32: 1>} : vector<8x8xi32>
      %29 = arith.cmpi eq, %27, %28 : vector<8x8xi32>
      %cst_18 = arith.constant 0.000000e+00 : f32
      %30 = vector.broadcast %cst_18 : f32 to vector<8x8xf32>
      %31 = arith.select %29, %17, %30 : vector<8x8xi1>, vector<8x8xf32>
      %32 = vector.shape_cast %31 : vector<8x8xf32> to vector<1x8x8xf32>
      %cst_19 = arith.constant dense<0.000000e+00> : vector<1xf32>
      %33 = vector.multi_reduction <add>, %32, %cst_19 [1, 2] : vector<1x8x8xf32> to vector<1xf32>
      %34 = vector.shape_cast %33 : vector<1xf32> to vector<1x1x1xf32>
      %35 = vector.extract %34[0, 0, 0] : f32 from vector<1x1x1xf32>
      %36 = arith.cmpi eq, %1, %3 : i32
      %cst_20 = arith.constant 0.000000e+00 : f32
      %37 = arith.select %36, %35, %cst_20 : f32
      %38 = vector.broadcast %37 : f32 to vector<1x1x128xf32>
      %c0_21 = arith.constant 0 : index
      %c0_22 = arith.constant 0 : index
      %c0_23 = arith.constant 0 : index
      %39 = vector.load %arg7[%c0_21, %c0_22, %c0_23] : memref<1x1x128xf32, #tpu.memory_space<vmem>>, vector<1x1x128xf32>
      tpu.vector_store %arg7[%c0_21, %c0_22, %c0_23], %38 {strides = array<i32>} : memref<1x1x128xf32, #tpu.memory_space<vmem>>, vector<1x1x128xf32>,
    } else {
    }
    return
  }
  func.func @transform_0(%arg0: i32, %arg1: i32, %arg2: memref<1xi32, #tpu.memory_space<smem>>, %arg3: memref<1xi32, #tpu.memory_space<smem>>) -> (i32, i32) {
    %0 = arith.index_cast %arg0 : i32 to index
    %1 = memref.load %arg2[%0] : memref<1xi32, #tpu.memory_space<smem>>
    %c0_i32 = arith.constant 0 : i32
    %c0_i32_0 = arith.constant 0 : i32
    return %1, %c0_i32 : i32, i32
  }
  func.func @transform_1(%arg0: i32, %arg1: i32, %arg2: memref<1xi32, #tpu.memory_space<smem>>, %arg3: memref<1xi32, #tpu.memory_space<smem>>) -> (i32, i32) {
    %0 = arith.index_cast %arg0 : i32 to index
    %1 = memref.load %arg3[%0] : memref<1xi32, #tpu.memory_space<smem>>
    %c0_i32 = arith.constant 0 : i32
    return %1, %arg1 : i32, i32
  }
  func.func @transform_2(%arg0: i32, %arg1: i32, %arg2: memref<1xi32, #tpu.memory_space<smem>>, %arg3: memref<1xi32, #tpu.memory_space<smem>>) -> (i32, i32, i32) {
    %c0_i32 = arith.constant 0 : i32
    %c0_i32_0 = arith.constant 0 : i32
    %c0_i32_1 = arith.constant 0 : i32
    return %arg0, %c0_i32, %c0_i32_0 : i32, i32, i32
  }
  func.func @transform_3(%arg0: i32, %arg1: i32, %arg2: memref<1xi32, #tpu.memory_space<smem>>, %arg3: memref<1xi32, #tpu.memory_space<smem>>) -> (i32, i32, i32) {
    %c0_i32 = arith.constant 0 : i32
    %c0_i32_0 = arith.constant 0 : i32
    %c0_i32_1 = arith.constant 0 : i32
    return %arg0, %c0_i32, %c0_i32_0 : i32, i32, i32
  }
}

</mosaic_0001>

<llo_original>
// kernel: tpu_custom_call.1
$region0: #{tpu_custom_call.1}
  #allocation0 [shape = 'u32[]', space=smem, size = 0x4, offset = 0x4, fixed_abs, tag = 'smem constant byte address 0x4 - core index']
  #allocation1 [shape = 'u32[72,128]{1,0:T(1,128)}', space=vmem, size = 0x9000, scoped, tag = 'internal scratch']
  #allocation2 [shape = 'f32[8,8]{1,0:T(8,128)}', space=vmem, size = 0x1000, scoped, tag = 'scratch operand']
  #allocation3 [shape = 's32[1]{0}', space=sflag, size = 0x4, scoped, tag = 'scoped memory for tpu_custom_call.1']
  #allocation4 [shape = 's32[1]{0:T(128)S(6)}', space=smem, size = 0x200, scoped, tag = 'prefetched SMEM operand 0']
  #allocation5 [shape = 's32[1]{0:T(128)S(6)}', space=smem, size = 0x200, scoped, tag = 'prefetched SMEM operand 1']
  %s0 = inlined_call_operand.<no memory space> [shape: s32[1], index: 0, kind: input, shape index: {}]
  %s1 = inlined_call_operand.<no memory space> [shape: s32[1], index: 1, kind: input, shape index: {}]
  %s2 = inlined_call_operand.hbm [shape: f32[8,128], index: 2, kind: input, shape index: {}]
  %s3 = inlined_call_operand.hbm [shape: f32[8,128], index: 3, kind: input, shape index: {}]
  %s4 = inlined_call_operand.hbm [shape: f32[1,1,128], index: 4, kind: output, shape index: {0}]
  %s5 = inlined_call_operand.hbm [shape: f32[1,1,128], index: 5, kind: output, shape index: {1}]
  %6 = xla_tuple %s4, %s5
  %s7 = sld [smem:[#allocation0]]
  $region42: #{tpu_custom_call.1} parent=0
    _
  %s9 = ssub.s32 1, %s7
  %s10 = scalar_select 0, %s9, %s7
  %11 = sst [smem:[#allocation4]] %s0
  %12 = sst [smem:[#allocation5]] %s1
  $region1: #{tpu_custom_call.1} parent=0
    #allocation6 [shape = 'u8[4096]{0}', space=vmem, size = 0x1000, scoped, tag = 'input window, operand 2, single buffered']
    #allocation7 [shape = 's32[1]{0}', space=sflag, size = 0x4, scoped, tag = 'scoped memory for tpu_custom_call.1']
    #allocation8 [shape = 's32[1]{0}', space=sflag, size = 0x4, scoped, tag = 'scoped memory for tpu_custom_call.1']
    #allocation9 [shape = 'u8[4096]{0}', space=vmem, size = 0x1000, scoped, tag = 'input window, operand 3, single buffered']
    #allocation10 [shape = 's32[1]{0}', space=sflag, size = 0x4, scoped, tag = 'scoped memory for tpu_custom_call.1']
    #allocation11 [shape = 'u8[512]{0}', space=vmem, size = 0x400, scoped, tag = 'output window, operand 0, single buffered']
    #allocation12 [shape = 'u8[512]{0}', space=vmem, size = 0x400, scoped, tag = 'output window, operand 1, single buffered']
    #allocation13 [shape = 's32[1]{0}', space=sflag, size = 0x4, scoped, tag = 'scoped memory for tpu_custom_call.1']
    %13 = vsyncpa [#allocation7], 0
    %14 = vsyncpa [#allocation10], 0
    %15 = vsyncpa [#allocation8], 0
    %16 = vsyncpa [#allocation13], 0
    // Predicated region
    $region2: #{tpu_custom_call.1} parent=1 // pred_check
      _
    $region3: #{tpu_custom_call.1} parent=1 // pred_check_branch
      %18 = sbr.rel (0) target = $region5
    $region4: #{tpu_custom_call.1} parent=1 // pred_region
      %s19 = sld [smem:[#allocation4]]
      %21 = vsyncadd [#allocation7], 0
      %s22 = smul.addr %s19, 8
      %s23 = scalar_lea.hbm %s2, %s22
      %s25 = sshll.u32 %s23, 4
      %s26 = int_to_ptr.hbm [resolvable:$true] %s25
      %s27 = sshll.u32 [#allocation6], 4
      %s28 = int_to_ptr.vmem [resolvable:$true] %s27
      %30 = dma.hbm_to_vmem [thread:$0]  %s26, 128, %s28, [#allocation7]
    $region5: #{tpu_custom_call.1} parent=1 // pred_fallthru
      _
    // Predicated region
    $region6: #{tpu_custom_call.1} parent=1 // pred_check
      _
    $region7: #{tpu_custom_call.1} parent=1 // pred_check_branch
      %32 = sbr.rel (0) target = $region9
    $region8: #{tpu_custom_call.1} parent=1 // pred_region
      %s33 = sld [smem:[#allocation5]]
      %35 = vsyncadd [#allocation10], 0
      %s36 = smul.addr %s33, 8
      %s37 = scalar_lea.hbm %s3, %s36
      %s39 = sshll.u32 %s37, 4
      %s40 = int_to_ptr.hbm [resolvable:$true] %s39
      %s41 = sshll.u32 [#allocation9], 4
      %s42 = int_to_ptr.vmem [resolvable:$true] %s41
      %44 = dma.hbm_to_vmem [thread:$0]  %s40, 128, %s42, [#allocation10]
    $region9: #{tpu_custom_call.1} parent=1 // pred_fallthru
      _
    // Predicated region
    $region10: #{tpu_custom_call.1} parent=1 // pred_check
      _
    $region11: #{tpu_custom_call.1} parent=1 // pred_check_branch
      %46 = sbr.rel (0) target = $region13
    $region12: #{tpu_custom_call.1} parent=1 // pred_region
      %48 = dma.done [#allocation7], 128
    $region13: #{tpu_custom_call.1} parent=1 // pred_fallthru
      _
    // Predicated region
    $region14: #{tpu_custom_call.1} parent=1 // pred_check
      _
    $region15: #{tpu_custom_call.1} parent=1 // pred_check_branch
      %50 = sbr.rel (0) target = $region17
    $region16: #{tpu_custom_call.1} parent=1 // pred_region
      %52 = dma.done [#allocation10], 128
    $region17: #{tpu_custom_call.1} parent=1 // pred_fallthru
      _
    %s53 = sld [smem:[#allocation4]]
    %s54 = sld [smem:[#allocation5]]
    %s55 = sld [smem:[#allocation4]]
    %s56 = sld [smem:[#allocation5]]
    %p57 = scmp.eq.s32.totalorder 0, 0
    // Predicated region
    $region18: #{tpu_custom_call.1} parent=1 // pred_check
      %p58 = pneg %p57
    $region19: #{tpu_custom_call.1} parent=1 // pred_check_branch
      %60 = sbr.rel (%p58) target = $region21
    $region20: #{tpu_custom_call.1} parent=1 // pred_region
      %vm61 = vcmask 64512
      %62 = vst.msk [vmem:[#allocation2] sm:$0xff] %vm61, 0.0
    $region21: #{tpu_custom_call.1} parent=1 // pred_fallthru
      _
    %v63 = vld [vmem:[#allocation6] sm:$0xff]
    %v64 = vld [vmem:[#allocation2] sm:$0xff]
    %v65 = vld [vmem:[#allocation9] sm:$0xff]
    %66 = vmatpush.xpose.msra.mxu0 0.0
    %67 = vmatpush.xpose.msra.mxu0 0.0
    %68 = vmatpush.xpose.msra.mxu0 0.0
    %69 = vmatpush.xpose.msra.mxu0 0.0
    %70 = vmatpush.xpose.msra.mxu0 0.0
    %71 = vmatpush.xpose.msra.mxu0 0.0
    %72 = vmatpush.xpose.msra.mxu0 0.0
    %73 = vmatpush.xpose.msra.mxu0 0.0
    %74 = vmatpush.xpose.msra.mxu0 0.0
    %75 = vmatpush.xpose.msra.mxu0 0.0
    %76 = vmatpush.xpose.msra.mxu0 0.0
    %77 = vmatpush.xpose.msra.mxu0 0.0
    %78 = vmatpush.xpose.msra.mxu0 0.0
    %79 = vmatpush.xpose.msra.mxu0 0.0
    %80 = vmatpush.xpose.msra.mxu0 0.0
    %81 = vmatpush.xpose.msra.mxu0 %v65
    %82 = vmatmul.f32.gmra.mxu0 %v63
    %v83 = vpop.f32.mrf.mxu0
    %v84 = vadd.f32 0.0, %v83
    %85 = vdwg.mxu0
    %v86 = vadd.f32 %v64, %v84
    %vm87 = vcmask 64512
    %88 = vst.msk [vmem:[#allocation2] sm:$0xff] %vm87, %v86
    // Predicated region
    $region22: #{tpu_custom_call.1} parent=1 // pred_check
      %p89 = pneg %p57
    $region23: #{tpu_custom_call.1} parent=1 // pred_check_branch
      %91 = sbr.rel (%p89) target = $region25
    $region24: #{tpu_custom_call.1} parent=1 // pred_region
      %v92 = vld [vmem:[#allocation2] sm:$0xff]
      %v93 = vand.u32 2147483647, %v92
      %v94 = vsel %vm87, %v93, 0.0
      %95 = vadd.xlane.f32.xlu0 %v94
      %v96 = vpop.xlane.xlu0 %95
      %v97 = vrot.slane %v96, 4
      %v98 = vadd.f32 %v96, %v97
      %v99 = vrot.slane %v98, 2
      %v100 = vadd.f32 %v98, %v99
      %v101 = vrot.slane %v100, 1
      %v102 = vadd.f32 %v100, %v101
      %s103 = vtos %v102
      %p104 = scmp.eq.s32.totalorder %s55, %s56
      %s105 = scalar_select %p104, 1.0, 2.0
      %s106 = smul.f32 %s105, %s103
      %v107 = vstv %s106
      %108 = vst [vmem:[#allocation11] sm:$0x1] %v107
      %v109 = vlaneseq
      %v110 = vshrl.u32 %v109, 7
      %v111 = vlaneseq
      %v112 = vand.u32 %v111, 127
      %vm113 = vcmp.eq.s32.totalorder %v110, %v112
      %v114 = vsel %vm113, %v93, 0.0
      %v115 = vsel %vm87, %v114, 0.0
      %116 = vadd.xlane.f32.xlu0 %v115
      %v117 = vpop.xlane.xlu0 %116
      %v118 = vrot.slane %v117, 4
      %v119 = vadd.f32 %v117, %v118
      %v120 = vrot.slane %v119, 2
      %v121 = vadd.f32 %v119, %v120
      %v122 = vrot.slane %v121, 1
      %v123 = vadd.f32 %v121, %v122
      %s124 = vtos %v123
      %s125 = scalar_select %p104, %s124, 0.0
      %v126 = vstv %s125
      %127 = vst [vmem:[#allocation12] sm:$0x1] %v126
    $region25: #{tpu_custom_call.1} parent=1 // pred_fallthru
      _
    // Predicated region
    $region26: #{tpu_custom_call.1} parent=1 // pred_check
      _
    $region27: #{tpu_custom_call.1} parent=1 // pred_check_branch
      %129 = sbr.rel (0) target = $region29
    $region28: #{tpu_custom_call.1} parent=1 // pred_region
      %131 = vsyncadd [#allocation8], 0
      %s133 = sshll.u32 [#allocation11], 4
      %s134 = int_to_ptr.vmem [resolvable:$true] %s133
      %s135 = sshll.u32 %s4, 4
      %s136 = int_to_ptr.hbm [resolvable:$true] %s135
      %138 = dma.vmem_to_hbm [thread:$0]  %s134, 16, %s136, [#allocation8]
    $region29: #{tpu_custom_call.1} parent=1 // pred_fallthru
      _
    // Predicated region
    $region30: #{tpu_custom_call.1} parent=1 // pred_check
      _
    $region31: #{tpu_custom_call.1} parent=1 // pred_check_branch
      %140 = sbr.rel (0) target = $region33
    $region32: #{tpu_custom_call.1} parent=1 // pred_region
      %142 = vsyncadd [#allocation13], 0
      %s144 = sshll.u32 [#allocation12], 4
      %s145 = int_to_ptr.vmem [resolvable:$true] %s144
      %s146 = sshll.u32 %s5, 4
      %s147 = int_to_ptr.hbm [resolvable:$true] %s146
      %149 = dma.vmem_to_hbm [thread:$0]  %s145, 16, %s147, [#allocation13]
    $region33: #{tpu_custom_call.1} parent=1 // pred_fallthru
      _
    // Predicated region
    $region34: #{tpu_custom_call.1} parent=1 // pred_check
      _
    $region35: #{tpu_custom_call.1} parent=1 // pred_check_branch
      %151 = sbr.rel (0) target = $region37
    $region36: #{tpu_custom_call.1} parent=1 // pred_region
      %153 = dma.done [#allocation8], 16
    $region37: #{tpu_custom_call.1} parent=1 // pred_fallthru
      _
    // Predicated region
    $region38: #{tpu_custom_call.1} parent=1 // pred_check
      _
    $region39: #{tpu_custom_call.1} parent=1 // pred_check_branch
      %155 = sbr.rel (0) target = $region41
    $region40: #{tpu_custom_call.1} parent=1 // pred_region
      %157 = dma.done [#allocation13], 16
    $region41: #{tpu_custom_call.1} parent=1 // pred_fallthru
      _
    %158 = vsyncpa [#allocation7], 1
    %159 = vsyncpa [#allocation10], 1
    %160 = vsyncpa [#allocation8], 1
    %161 = vsyncpa [#allocation13], 1

</llo_original>
